<compile_context>
chip_gen: v6e
topology: v6e:2x2x1
jax: 0.10.0
libtpu: 0.0.40
codegen_flags: <defaults>
</compile_context>

<pallas_src>
import math

import jax
import jax.numpy as jnp
from jax.experimental import pallas as pl
from jax.experimental.pallas import tpu as pltpu


# ---------------------------------------------------------------------------
# Parameter init (matches the PyTorch __init__ exactly).
# ---------------------------------------------------------------------------
def _make_pos_encoding(d_model: int, length: int) -> jnp.ndarray:
    i = jnp.arange(d_model, dtype=jnp.float32)
    even = (i % 2) == 0
    freqs = jnp.where(
        even,
        10000.0 ** (-i / d_model),
        -(10000.0 ** ((1.0 - i) / d_model)),
    )[:, None]                                              # (d_model, 1)
    phases = jnp.where(even, 0.0, math.pi / 2.0)[:, None]   # (d_model, 1)
    pos = jnp.arange(length, dtype=jnp.float32)[None, :]    # (1, length)
    return jnp.sin(pos * freqs + phases)                     # (d_model, length)


# ---------------------------------------------------------------------------
# Tiling helpers.
# ---------------------------------------------------------------------------
_LANE = 128
_TARGET_BLOCK_BYTES = 2 * 1024 * 1024   # ~86% HBM-roofline class for f32 adds
_MAX_BLOCK_BYTES = 4 * 1024 * 1024      # hard cap: 4 double-buffered blocks + pe
                                        # stays well inside the 32 MiB scoped VMEM


def _round_up(n: int, m: int) -> int:
    return ((n + m - 1) // m) * m


def _largest_aligned_divisor(n: int, align: int, upper: int) -> int:
    """Largest divisor of n that is a multiple of `align` and <= upper.

    Requires n % align == 0; always returns at least `align`.
    """
    assert n % align == 0
    t = min((upper // align) * align, n)
    while t >= align:
        if n % t == 0:
            return t
        t -= align
    return align


def _choose_tiles(B: int, DLp: int, itemsize: int):
    """Pick a (bb, tn) block for a (B, DLp) array (DLp a multiple of 128)."""
    sub_align = max(8, 32 // itemsize)       # 8 f32, 16 bf16, 32 int8/fp8 packing
    b_aligned = (B % sub_align == 0)
    min_bb = sub_align if b_aligned else B   # full extent is always legal
    row_bytes = DLp * itemsize

    if min_bb * row_bytes <= _MAX_BLOCK_BYTES:
        # Preferred: full-row (contiguous) blocks -> one long DMA per buffer,
        # gj == 1, pe fetched exactly once for the whole kernel.
        tn = DLp
        if b_aligned:
            max_bb = max(sub_align,
                         (_TARGET_BLOCK_BYTES // row_bytes) // sub_align * sub_align)
            bb = _largest_aligned_divisor(B, sub_align, max_bb)
        else:
            bb = B
    else:
        # Rows too large for a single block: tile the lane axis, keep the
        # sublane tile minimal so the block stays near the target size.
        bb = min_bb
        max_tn = max(_LANE,
                     (_TARGET_BLOCK_BYTES // (bb * itemsize)) // _LANE * _LANE)
        tn = _largest_aligned_divisor(DLp, _LANE, max_tn)

    # v7x has two TensorCores: guarantee >= 2 blocks along a parallel axis
    # whenever it is legal to split, so neither core sits idle.
    if B // bb == 1 and DLp // tn == 1:
        if B % 2 == 0 and (B // 2) % sub_align == 0:
            bb = B // 2
        elif DLp % (2 * _LANE) == 0:
            tn = DLp // 2
    return bb, tn


# ---------------------------------------------------------------------------
# Kernel.
# ---------------------------------------------------------------------------
def _pos_add_kernel(x_ref, pe_ref, o_ref):
    # x_ref / o_ref: (bb, tn) lane-dense tile of the flattened activations.
    # pe_ref:        (1, tn)  positional-encoding row (f32), broadcast over sublanes.
    # Explicit cast keeps this dtype-robust (e.g. bf16 x with f32 pe).
    o_ref[...] = (x_ref[...] + pe_ref[...]).astype(o_ref.dtype)


def pos_encoder(x: jnp.ndarray, pos_encoding: jnp.ndarray,
                *, donate_x: bool = False) -> jnp.ndarray:
    """x: (B, d_model, length); pos_encoding: (d_model, length) float32."""
    B, D, L = x.shape
    assert pos_encoding.shape == (D, L)
    DL = D * L
    itemsize = jnp.dtype(x.dtype).itemsize
    sub_align = max(8, 32 // itemsize)

    # Lane-dense flattened views (contiguous reshapes; free at XLA level).
    x2 = x.reshape(B, DL)
    pe2 = pos_encoding.reshape(1, DL)

    # Hardened fallback: keep the lane dim a multiple of 128 so stores stay
    # unmasked / lane-dense and blocks never silently become full-extent.
    DLp = _round_up(DL, _LANE)
    if DLp != DL:
        # TODO(synk): this pad costs one extra pass; a 3-D (B, D-tile, L)
        # blocking would avoid it at the price of masked partial stores.
        x2 = jnp.pad(x2, ((0, 0), (0, DLp - DL)))
        pe2 = jnp.pad(pe2, ((0, 0), (0, DLp - DL)))

    # Pathological batch sizes (huge and not sublane-aligned) would force a
    # full-extent sublane block that can blow VMEM: pad the batch instead.
    Bp = B
    if B % sub_align != 0 and B * _LANE * itemsize > _MAX_BLOCK_BYTES:
        Bp = _round_up(B, sub_align)
        x2 = jnp.pad(x2, ((0, Bp - B), (0, 0)))

    bb, tn = _choose_tiles(Bp, DLp, itemsize)
    gj = DLp // tn
    gb = Bp // bb

    out2 = pl.pallas_call(
        _pos_add_kernel,
        out_shape=jax.ShapeDtypeStruct((Bp, DLp), x.dtype),
        grid_spec=pltpu.PrefetchScalarGridSpec(
            num_scalar_prefetch=0,
            # Lane-tile axis outermost: the pe block index is constant over the
            # inner batch sweep, so total pe DMA traffic is exactly one pass.
            grid=(gj, gb),
            in_specs=[
                pl.BlockSpec((bb, tn), lambda j, b: (b, j)),
                pl.BlockSpec((1, tn), lambda j, b: (0, j)),
            ],
            out_specs=pl.BlockSpec((bb, tn), lambda j, b: (b, j)),
        ),
        compiler_params=pltpu.CompilerParams(
            dimension_semantics=("parallel", "parallel"),
            # ~4 x (<=4 MiB) double-buffered blocks + pe << 32 MiB; explicit
            # limit keeps v5e (16 MiB scoped default) happy, is the default on
            # v6e/v7x, and stays well under v7x's 64 MiB physical VMEM.
            vmem_limit_bytes=32 * 1024 * 1024,
        ),
        # When the caller can donate x: reuse its HBM buffer for the output.
        input_output_aliases=({0: 0} if donate_x else {}),
    )(x2, pe2)

    if DLp != DL or Bp != B:
        out2 = out2[:B, :DL]
    return out2.reshape(B, D, L)


if __name__ == "__main__":
    key = jax.random.PRNGKey(0)

    # Case 1: small, "nice" shapes (DL multiple of 128).
    B, D_MODEL, LENGTH = 2, 32, 16
    k1, k2 = jax.random.split(key)
    x = jax.random.normal(k1, (B, D_MODEL, LENGTH), dtype=jnp.float32)
    pe = _make_pos_encoding(D_MODEL, LENGTH)
    out = jax.block_until_ready(pos_encoder(x, pe))
    ref = x + pe[None, :, :]
    assert out.shape == (B, D_MODEL, LENGTH)
    assert jnp.allclose(out, ref, atol=1e-6, rtol=1e-6), "mismatch vs reference (case 1)"

    # Case 2: exercises the hardened fallbacks (DL not a multiple of 128,
    # batch not a multiple of 8).
    B2, D2, L2 = 3, 24, 10
    x2 = jax.random.normal(k2, (B2, D2, L2), dtype=jnp.float32)
    pe2 = _make_pos_encoding(D2, L2)
    out2 = jax.block_until_ready(pos_encoder(x2, pe2))
    ref2 = x2 + pe2[None, :, :]
    assert out2.shape == (B2, D2, L2)
    assert jnp.allclose(out2, ref2, atol=1e-6, rtol=1e-6), "mismatch vs reference (case 2)"

    print("KERNEL_OK")
</pallas_src>

<mosaic_0001>
module attributes {stable_mosaic.version = 11 : i64} {
  func.func @_pos_add_kernel(%arg0: i32, %arg1: i32, %arg2: memref<2x256xf32, #tpu.memory_space<vmem>>, %arg3: memref<1x256xf32, #tpu.memory_space<vmem>>, %arg4: memref<2x256xf32, #tpu.memory_space<vmem>>) attributes {dimension_semantics = [#tpu.dimension_semantics<parallel>, #tpu.dimension_semantics<parallel>], iteration_bounds = array<i64: 2, 1>, scalar_prefetch = 0 : i64, scratch_operands = 0 : i64, tpu.core_type = #tpu.core_type<tc>, window_params = [{transform_indices = @transform_0, window_bounds = array<i64: 2, 256>}, {transform_indices = @transform_1, window_bounds = array<i64: 1, 256>}, {transform_indices = @transform_2, window_bounds = array<i64: 2, 256>}]} {
    %c0 = arith.constant 0 : index
    %c0_0 = arith.constant 0 : index
    %0 = vector.load %arg2[%c0, %c0_0] : memref<2x256xf32, #tpu.memory_space<vmem>>, vector<2x256xf32>
    %c0_1 = arith.constant 0 : index
    %c0_2 = arith.constant 0 : index
    %1 = vector.load %arg3[%c0_1, %c0_2] : memref<1x256xf32, #tpu.memory_space<vmem>>, vector<1x256xf32>
    %2 = vector.broadcast %1 : vector<1x256xf32> to vector<2x256xf32>
    %3 = arith.addf %0, %2 : vector<2x256xf32>
    %c0_3 = arith.constant 0 : index
    %c0_4 = arith.constant 0 : index
    %4 = vector.load %arg4[%c0_3, %c0_4] : memref<2x256xf32, #tpu.memory_space<vmem>>, vector<2x256xf32>
    tpu.vector_store %arg4[%c0_3, %c0_4], %3 {strides = array<i32>} : memref<2x256xf32, #tpu.memory_space<vmem>>, vector<2x256xf32>,
    return
  }
  func.func @transform_0(%arg0: i32, %arg1: i32) -> (i32, i32) {
    %c0_i32 = arith.constant 0 : i32
    return %arg1, %arg0 : i32, i32
  }
  func.func @transform_1(%arg0: i32, %arg1: i32) -> (i32, i32) {
    %c0_i32 = arith.constant 0 : i32
    %c0_i32_0 = arith.constant 0 : i32
    return %c0_i32, %arg0 : i32, i32
  }
  func.func @transform_2(%arg0: i32, %arg1: i32) -> (i32, i32) {
    %c0_i32 = arith.constant 0 : i32
    return %arg1, %arg0 : i32, i32
  }
}

</mosaic_0001>

<llo_original>
// kernel: tpu_custom_call.1
$region0: #{tpu_custom_call.1}
  #allocation0 [shape = 'u32[]', space=smem, size = 0x4, offset = 0x4, fixed_abs, tag = 'smem constant byte address 0x4 - core index']
  #allocation1 [shape = 'u32[144,128]{1,0:T(1,128)}', space=vmem, size = 0x12000, scoped, tag = 'internal scratch']
  %s0 = inlined_call_operand.hbm [shape: f32[2,512], index: 0, kind: input, shape index: {}]
  %s1 = inlined_call_operand.hbm [shape: f32[1,512], index: 1, kind: input, shape index: {}]
  %s2 = inlined_call_operand.hbm [shape: f32[2,512], index: 2, kind: output, shape index: {}]
  %s3 = sld [smem:[#allocation0]]
  $region49: #{tpu_custom_call.1} parent=0
    _
  %s5 = ssub.s32 1, %s3
  %s6 = scalar_select 0, %s5, %s3
  $region1: #{tpu_custom_call.1} parent=0
    #allocation2 [shape = 'u8[4096]{0}', space=vmem, size = 0x1000, scoped, tag = 'input window, operand 0']
    #allocation3 [shape = 's32[2]{0}', space=sflag, size = 0x8, scoped, tag = 'scoped memory for tpu_custom_call.1']
    #allocation4 [shape = 's32[2]{0}', space=sflag, size = 0x8, scoped, tag = 'scoped memory for tpu_custom_call.1']
    #allocation5 [shape = 'u8[2048]{0}', space=vmem, size = 0x800, scoped, tag = 'input window, operand 1']
    #allocation6 [shape = 's32[2]{0}', space=sflag, size = 0x8, scoped, tag = 'scoped memory for tpu_custom_call.1']
    #allocation7 [shape = 'u8[4096]{0}', space=vmem, size = 0x1000, scoped, tag = 'output window, operand 0']
    %7 = vsyncpa [#allocation3], 0
    %s8 = scalar_lea.sflag [#allocation3], 1
    %9 = vsyncpa %s8, 0
    %10 = vsyncpa [#allocation6], 0
    %s11 = scalar_lea.sflag [#allocation6], 1
    %12 = vsyncpa %s11, 0
    %13 = vsyncpa [#allocation4], 0
    %s14 = scalar_lea.sflag [#allocation4], 1
    %15 = vsyncpa %s14, 0
    loop: start=0, step=1, limit=4
    $region2: #{tpu_custom_call.1} parent=1 // loop_pre_header
      _
    $region3: #{tpu_custom_call.1} parent=1 // loop_header
      %s17 = sphi 0, %s21
      %p18 = scmp.ge.s32.totalorder %s17, 4
      %s24 = sphi 0, %s36
      %s25 = sphi 0, %s32
      %s26 = sphi 0, %s24
      %s27 = sphi 0, %s25
      %s28 = sphi 0, %s26
      %s29 = sphi 0, %s27
      %s41 = sphi 0, %s43
      %s44 = sphi 0, %s41
      %s45 = sphi 0, %s44
      %s61 = sphi 0, %s45
      %s67 = sphi 0, %s69
      %s70 = sphi 0, %s67
      %s71 = sphi 0, %s70
      %s87 = sphi 0, %s71
      %s95 = sphi 0, %s97
      %s98 = sphi 0, %s95
      %s99 = sphi 0, %s98
      %s115 = sphi 0, %s99
    $region4: #{tpu_custom_call.1} parent=1 // loop_header_branch
      %20 = sbr.rel (%p18) target = $region8
    $region5: #{tpu_custom_call.1} parent=1 // loop_body
      %s22 = ssub.s32 %s17, 1
      %s23 = ssub.s32 %s17, 2
      %s30 = sadd.s32 1, %s25
      %p31 = scmp.ge.s32.totalorder %s30, 1
      %s32 = scalar_select %p31, 0, %s30
      %s33 = sadd.s32 1, %s24
      %s34 = scalar_select %p31, %s33, %s24
      %p35 = scmp.ge.s32.totalorder %s34, 2
      %s36 = scalar_select %p35, 0, %s34
      %s37 = ssub.s32 %s25, %s32
      %s38 = ssub.s32 %s24, %s36
      %s39 = sor.u32 %s37, %s38
      %p40 = scmp.eq.s32.totalorder %s39, 0
      %s42 = sadd.s32 %s41, 1
      %s43 = scalar_select %p40, %s41, %s42
      %p46 = pneg %p40
      %p47 = scmp.eq.s32.totalorder %s17, 1
      %p48 = por %p46, %p47
      %p49 = scmp.ne.s32.totalorder %s41, %s44
      %p50 = scmp.eq.s32.totalorder %s17, 0
      %p51 = por %p49, %p50
      %p52 = scmp.ne.s32.totalorder %s41, %s44
      %p53 = scmp.eq.s32.totalorder %s22, 1
      %p54 = por %p52, %p53
      %p55 = scmp.ne.s32.totalorder %s44, %s45
      %p56 = scmp.eq.s32.totalorder %s22, 0
      %p57 = por %p55, %p56
      %p58 = scmp.ne.s32.totalorder %s44, %s45
      %p59 = scmp.eq.s32.totalorder %s23, 1
      %p60 = por %p58, %p59
      %p62 = scmp.ne.s32.totalorder %s45, %s61
      %p63 = scmp.eq.s32.totalorder %s23, 0
      %p64 = por %p62, %p63
      %s65 = ssub.s32 %s24, %s36
      %p66 = scmp.eq.s32.totalorder %s65, 0
      %s68 = sadd.s32 %s67, 1
      %s69 = scalar_select %p66, %s67, %s68
      %p72 = pneg %p66
      %p73 = scmp.eq.s32.totalorder %s17, 1
      %p74 = por %p72, %p73
      %p75 = scmp.ne.s32.totalorder %s67, %s70
      %p76 = scmp.eq.s32.totalorder %s17, 0
      %p77 = por %p75, %p76
      %p78 = scmp.ne.s32.totalorder %s67, %s70
      %p79 = scmp.eq.s32.totalorder %s22, 1
      %p80 = por %p78, %p79
      %p81 = scmp.ne.s32.totalorder %s70, %s71
      %p82 = scmp.eq.s32.totalorder %s22, 0
      %p83 = por %p81, %p82
      %p84 = scmp.ne.s32.totalorder %s70, %s71
      %p85 = scmp.eq.s32.totalorder %s23, 1
      %p86 = por %p84, %p85
      %p88 = scmp.ne.s32.totalorder %s71, %s87
      %p89 = scmp.eq.s32.totalorder %s23, 0
      %p90 = por %p88, %p89
      %s91 = ssub.s32 %s25, %s32
      %s92 = ssub.s32 %s24, %s36
      %s93 = sor.u32 %s91, %s92
      %p94 = scmp.eq.s32.totalorder %s93, 0
      %s96 = sadd.s32 %s95, 1
      %s97 = scalar_select %p94, %s95, %s96
      %p100 = pneg %p94
      %p101 = scmp.eq.s32.totalorder %s17, 1
      %p102 = por %p100, %p101
      %p103 = scmp.ne.s32.totalorder %s95, %s98
      %p104 = scmp.eq.s32.totalorder %s17, 0
      %p105 = por %p103, %p104
      %p106 = scmp.ne.s32.totalorder %s95, %s98
      %p107 = scmp.eq.s32.totalorder %s22, 1
      %p108 = por %p106, %p107
      %p109 = scmp.ne.s32.totalorder %s98, %s99
      %p110 = scmp.eq.s32.totalorder %s22, 0
      %p111 = por %p109, %p110
      %p112 = scmp.ne.s32.totalorder %s98, %s99
      %p113 = scmp.eq.s32.totalorder %s23, 1
      %p114 = por %p112, %p113
      %p116 = scmp.ne.s32.totalorder %s99, %s115
      %p117 = scmp.eq.s32.totalorder %s23, 0
      %p118 = por %p116, %p117
      %p119 = scmp.le.s32.totalorder 1, %s17
      %p120 = scmp.lt.s32.totalorder %s17, 3
      %p121 = pnand %p119, %p120
      %p122 = pneg %p121
      // Predicated region
      $region9: #{tpu_custom_call.1} parent=5 // pred_check
        _
      $region10: #{tpu_custom_call.1} parent=5 // pred_check_branch
        %124 = sbr.rel (%p121) target = $region12
      $region11: #{tpu_custom_call.1} parent=5 // pred_region
        %s125 = ssub.s32 %s17, 1
      $region12: #{tpu_custom_call.1} parent=5 // pred_fallthru
        _
      %p126 = scmp.lt.s32.totalorder %s17, 2
      // Predicated region
      $region13: #{tpu_custom_call.1} parent=5 // pred_check
        %p127 = pneg %p126
      $region14: #{tpu_custom_call.1} parent=5 // pred_check_branch
        %129 = sbr.rel (%p127) target = $region16
      $region15: #{tpu_custom_call.1} parent=5 // pred_region
        // Predicated region
        $region17: #{tpu_custom_call.1} parent=15 // pred_check
          %p130 = pneg %p51
        $region18: #{tpu_custom_call.1} parent=15 // pred_check_branch
          %132 = sbr.rel (%p130) target = $region20
        $region19: #{tpu_custom_call.1} parent=15 // pred_region
          %s133 = sand.u32 %s41, 1
          %s134 = scalar_lea.sflag [#allocation3], %s133
          %s135 = sand.u32 %s41, 1
          %s136 = smul.addr %s135, 4
          %s137 = scalar_lea.vmem [#allocation2], %s136
          %s138 = smul.u32 2, %s24
          %s140 = ssub.s32 64, 64
          %141 = vsyncadd %s134, %s140
          %s142 = smul.addr %s25, 4
          %s143 = sadd.s32 %s138, %s142
          %s144 = smul.addr %s143, 32
          %s145 = scalar_lea.hbm %s0, %s144
          %s147 = sshll.u32 %s137, 4
          %s148 = int_to_ptr.vmem [resolvable:$true] %s147
          %150 = dma.hbm_to_vmem [thread:$0]  %s145, 64, %s148, %s134
        $region20: #{tpu_custom_call.1} parent=15 // pred_fallthru
          _
        // Predicated region
        $region21: #{tpu_custom_call.1} parent=15 // pred_check
          %p151 = pneg %p77
        $region22: #{tpu_custom_call.1} parent=15 // pred_check_branch
          %153 = sbr.rel (%p151) target = $region24
        $region23: #{tpu_custom_call.1} parent=15 // pred_region
          %s154 = sand.u32 %s67, 1
          %s155 = scalar_lea.sflag [#allocation6], %s154
          %s156 = sand.u32 %s67, 1
          %s157 = smul.addr %s156, 2
          %s158 = scalar_lea.vmem [#allocation5], %s157
          %s159 = smul.u32 2, %s24
          %s161 = ssub.s32 32, 32
          %162 = vsyncadd %s155, %s161
          %s163 = smul.addr %s159, 16
          %s164 = scalar_lea.hbm %s1, %s163
          %s166 = sshll.u32 %s158, 4
          %s167 = int_to_ptr.vmem [resolvable:$true] %s166
          %169 = dma.hbm_to_vmem [thread:$0]  %s164, 32, %s167, %s155
        $region24: #{tpu_custom_call.1} parent=15 // pred_fallthru
          _
      $region16: #{tpu_custom_call.1} parent=5 // pred_fallthru
        _
      %p170 = scmp.le.s32.totalorder 1, %s17
      %p171 = scmp.lt.s32.totalorder %s17, 3
      %p172 = pnand %p170, %p171
      %p173 = pneg %p172
      // Predicated region
      $region25: #{tpu_custom_call.1} parent=5 // pred_check
        _
      $region26: #{tpu_custom_call.1} parent=5 // pred_check_branch
        %175 = sbr.rel (%p172) target = $region28
      $region27: #{tpu_custom_call.1} parent=5 // pred_region
        %s176 = ssub.s32 %s17, 1
        %s177 = sand.u32 %s44, 1
        %s178 = scalar_lea.sflag [#allocation3], %s177
        %s179 = sand.u32 %s44, 1
        %s180 = smul.addr %s179, 4
        %s181 = scalar_lea.vmem [#allocation2], %s180
        // Predicated region
        $region29: #{tpu_custom_call.1} parent=27 // pred_check
          %p182 = pneg %p57
        $region30: #{tpu_custom_call.1} parent=27 // pred_check_branch
          %184 = sbr.rel (%p182) target = $region32
        $region31: #{tpu_custom_call.1} parent=27 // pred_region
          %185 = dma.done %s178, 64
        $region32: #{tpu_custom_call.1} parent=27 // pred_fallthru
          _
        %s186 = sand.u32 %s70, 1
        %s187 = scalar_lea.sflag [#allocation6], %s186
        %s188 = sand.u32 %s70, 1
        %s189 = smul.addr %s188, 2
        %s190 = scalar_lea.vmem [#allocation5], %s189
        // Predicated region
        $region33: #{tpu_custom_call.1} parent=27 // pred_check
          %p191 = pneg %p83
        $region34: #{tpu_custom_call.1} parent=27 // pred_check_branch
          %193 = sbr.rel (%p191) target = $region36
        $region35: #{tpu_custom_call.1} parent=27 // pred_region
          %194 = dma.done %s187, 32
        $region36: #{tpu_custom_call.1} parent=27 // pred_fallthru
          _
        %s195 = sand.u32 %s44, 1
        %s196 = scalar_lea.sflag [#allocation3], %s195
        %s197 = sand.u32 %s44, 1
        %s198 = smul.addr %s197, 4
        %s199 = scalar_lea.vmem [#allocation2], %s198
        %p200 = pneg %p57
        %p201 = pneg %p54
        %s202 = sand.u32 %s70, 1
        %s203 = scalar_lea.sflag [#allocation6], %s202
        %s204 = sand.u32 %s70, 1
        %s205 = smul.addr %s204, 2
        %s206 = scalar_lea.vmem [#allocation5], %s205
        %p207 = pneg %p83
        %p208 = pneg %p80
        %p209 = pneg %p111
        %p210 = pneg %p108
        %s211 = sand.u32 %s98, 1
        %s212 = scalar_lea.sflag [#allocation4], %s211
        %s213 = sand.u32 %s98, 1
        %s214 = smul.addr %s213, 4
        %s215 = scalar_lea.vmem [#allocation7], %s214
        %s216 = smul.u32 2, %s26
        %s217 = smul.u32 2, %s26
        %s218 = smul.u32 2, %s26
        %v219 = vld [vmem:[%s181] sm:$0xf]
        %v220 = vld [vmem:[%s190] sm:$0x3]
        %v222 = vlaneseq
        %v223 = vshrl.u32 %v222, 7
        %v224 = vsub.s32 0, %v223
        %v225 = vrot.slane %v220, %v224
        %v226 = vlaneseq
        %v227 = vshrl.u32 %v226, 7
        %v228 = vsub.s32 1, %v227
        %v229 = vrot.slane %v220, %v228
        %v230 = vcombine.low %v225, %v229
        %v232 = vunpack.c.l.s4 1983009808
        %v233 = vunpack.c.0.s8 %v232
        %v234 = vlaneseq
        %v235 = vshrl.u32 %v234, 7
        %v236 = vsub.s32 %v233, %v235
        %v237 = vrot.slane %v230, %v236
        %v239 = vadd.f32 %v219, %v237
        %240 = vst [vmem:[%s215] sm:$0xf] %v239
        %s241 = sand.u32 %s98, 1
        %s242 = scalar_lea.sflag [#allocation4], %s241
        %s243 = sand.u32 %s98, 1
        %s244 = smul.addr %s243, 4
        %s245 = scalar_lea.vmem [#allocation7], %s244
        // Predicated region
        $region37: #{tpu_custom_call.1} parent=27 // pred_check
          %p246 = pneg %p108
        $region38: #{tpu_custom_call.1} parent=27 // pred_check_branch
          %248 = sbr.rel (%p246) target = $region40
        $region39: #{tpu_custom_call.1} parent=27 // pred_region
          %s249 = smul.u32 2, %s26
          %s251 = ssub.s32 64, 64
          %252 = vsyncadd %s242, %s251
          %s253 = smul.addr %s27, 4
          %s254 = sadd.s32 %s249, %s253
          %s255 = smul.addr %s254, 32
          %s256 = scalar_lea.hbm %s2, %s255
          %s258 = sshll.u32 %s245, 4
          %s259 = int_to_ptr.vmem [resolvable:$true] %s258
          %261 = dma.vmem_to_hbm [thread:$0]  %s259, 64, %s256, %s242
        $region40: #{tpu_custom_call.1} parent=27 // pred_fallthru
          _
      $region28: #{tpu_custom_call.1} parent=5 // pred_fallthru
        _
      %p262 = scmp.le.s32.totalorder 2, %s17
      // Predicated region
      $region41: #{tpu_custom_call.1} parent=5 // pred_check
        %p263 = pneg %p262
      $region42: #{tpu_custom_call.1} parent=5 // pred_check_branch
        %265 = sbr.rel (%p263) target = $region44
      $region43: #{tpu_custom_call.1} parent=5 // pred_region
        %s266 = ssub.s32 %s17, 2
        // Predicated region
        $region45: #{tpu_custom_call.1} parent=43 // pred_check
          %p267 = pneg %p114
        $region46: #{tpu_custom_call.1} parent=43 // pred_check_branch
          %269 = sbr.rel (%p267) target = $region48
        $region47: #{tpu_custom_call.1} parent=43 // pred_region
          %s270 = sand.u32 %s99, 1
          %s271 = scalar_lea.sflag [#allocation4], %s270
          %s272 = sand.u32 %s99, 1
          %s273 = smul.addr %s272, 4
          %s274 = scalar_lea.vmem [#allocation7], %s273
          %275 = dma.done %s271, 64
        $region48: #{tpu_custom_call.1} parent=43 // pred_fallthru
          _
      $region44: #{tpu_custom_call.1} parent=5 // pred_fallthru
        _
    $region6: #{tpu_custom_call.1} parent=1 // loop_footer
      %s21 = sadd.s32 1, %s17
    $region7: #{tpu_custom_call.1} parent=1 // loop_footer_branch
      %16 = sbr.rel target = $region3
    $region8: #{tpu_custom_call.1} parent=1 // loop_exit
      _
    %276 = vsyncpa [#allocation3], 1
    %s277 = scalar_lea.sflag [#allocation3], 1
    %278 = vsyncpa %s277, 1
    %279 = vsyncpa [#allocation6], 1
    %s280 = scalar_lea.sflag [#allocation6], 1
    %281 = vsyncpa %s280, 1
    %282 = vsyncpa [#allocation4], 1
    %s283 = scalar_lea.sflag [#allocation4], 1
    %284 = vsyncpa %s283, 1

</llo_original>
